<compile_context>
chip_gen: v6e
topology: v6e:2x2x1
jax: 0.10.0
libtpu: 0.0.40
codegen_flags: <defaults>
</compile_context>

<pallas_src>
import functools

import jax
import jax.numpy as jnp
from jax.experimental import pallas as pl
from jax.experimental.pallas import tpu as pltpu


def _sppf_kernel(x_ref, w1_ref, b1_ref, w2_ref, b2_ref, o_ref, cat_ref,
                 *, H, W, k, mxu_dtype):
    """Fused SPPF for one image / one C2 slice, channel-major throughout.

    x_ref  : (1, C1, HW)      NCHW input, spatial flattened into lanes
    w1_ref : (C_, C1)         cv1 1x1 weight, BN scale folded, mxu_dtype
    b1_ref : (C_, 1)          cv1 folded BN bias (f32)
    w2_ref : (C2_blk, 4*C_)   cv2 1x1 weight slice, BN scale folded, mxu_dtype
    b2_ref : (C2_blk, 1)      cv2 folded BN bias slice (f32)
    o_ref  : (1, C2_blk, HW)  NCHW output, spatial flattened into lanes
    cat_ref: (4*C_, HW)       VMEM scratch holding cat([x, y1, y2, y3])
    """
    C_ = w1_ref.shape[0]
    HW = x_ref.shape[2]
    p = k // 2
    neg = jnp.float32(jnp.finfo(jnp.float32).min)

    # ---- cv1: 1x1 conv == (C_, C1) @ (C1, HW), folded BN bias, SiLU ---------
    x = x_ref[0].astype(mxu_dtype)
    y = jnp.dot(w1_ref[...], x, preferred_element_type=jnp.float32)
    y = y + b1_ref[...]
    x0 = y * jax.nn.sigmoid(y)                                  # (C_, HW) f32

    # ---- separable k x k, stride 1, -inf padded max pool --------------------
    # (C_, HW) slab: W-shifts are lane rolls, H-shifts are rolls by W.
    # Edge handling via iota masks (no padded scratch, no reshapes).
    lin = jax.lax.broadcasted_iota(jnp.int32, (C_, HW), 1)
    col = lin % W

    def pool_w(v):
        m = v
        for d in range(1, p + 1):
            if d < W:
                fwd = pltpu.roll(v, shift=HW - d, axis=1)       # fwd[i] = v[i+d]
                m = jnp.maximum(m, jnp.where(col < W - d, fwd, neg))
                bwd = pltpu.roll(v, shift=d, axis=1)            # bwd[i] = v[i-d]
                m = jnp.maximum(m, jnp.where(col >= d, bwd, neg))
        return m

    def pool_h(v):
        m = v
        for d in range(1, p + 1):
            if d * W < HW:
                fwd = pltpu.roll(v, shift=HW - d * W, axis=1)
                m = jnp.maximum(m, jnp.where(lin < HW - d * W, fwd, neg))
                bwd = pltpu.roll(v, shift=d * W, axis=1)
                m = jnp.maximum(m, jnp.where(lin >= d * W, bwd, neg))
        return m

    def maxpool(v):
        return pool_h(pool_w(v))

    # ---- build cat([x, y1, y2, y3]) channel-major in a persistent scratch ---
    cat_ref[0 * C_:1 * C_, :] = x0.astype(mxu_dtype)
    y1 = maxpool(x0)
    cat_ref[1 * C_:2 * C_, :] = y1.astype(mxu_dtype)
    y2 = maxpool(y1)
    cat_ref[2 * C_:3 * C_, :] = y2.astype(mxu_dtype)
    y3 = maxpool(y2)
    cat_ref[3 * C_:4 * C_, :] = y3.astype(mxu_dtype)

    # ---- cv2: single (C2_blk, 4C_) @ (4C_, HW) dot + folded BN bias + SiLU --
    z = jnp.dot(w2_ref[...], cat_ref[...], preferred_element_type=jnp.float32)
    z = z + b2_ref[...]
    z = z * jax.nn.sigmoid(z)

    # lane-dense, channel-major store; already in NCHW layout (no transpose)
    o_ref[0] = z.astype(o_ref.dtype)


def sppf_forward(x, cv1_w, bn1_gamma, bn1_beta, bn1_mean, bn1_var,
                 cv2_w, bn2_gamma, bn2_beta, bn2_mean, bn2_var,
                 *, k=5, eps=1e-5, mxu_dtype=jnp.bfloat16):
    """SPPF forward (eval-mode BN).  x: (B, C1, H, W) NCHW -> (B, C2, H, W)."""
    B, C1, H, W = x.shape
    C_ = cv1_w.shape[0]
    C2 = cv2_w.shape[0]
    assert cv1_w.shape == (C_, C1, 1, 1) and C_ == C1 // 2, cv1_w.shape
    assert cv2_w.shape == (C2, 4 * C_, 1, 1), cv2_w.shape
    HW = H * W

    # --- fold eval-mode BatchNorm into conv weight scale + bias --------------
    inv1 = jax.lax.rsqrt(bn1_var + eps)
    w1 = (cv1_w.reshape(C_, C1) * (bn1_gamma * inv1)[:, None]).astype(mxu_dtype)
    b1 = (bn1_beta - bn1_gamma * bn1_mean * inv1).reshape(C_, 1).astype(jnp.float32)

    inv2 = jax.lax.rsqrt(bn2_var + eps)
    w2 = (cv2_w.reshape(C2, 4 * C_) * (bn2_gamma * inv2)[:, None]).astype(mxu_dtype)
    b2 = (bn2_beta - bn2_gamma * bn2_mean * inv2).reshape(C2, 1).astype(jnp.float32)

    x3 = x.reshape(B, C1, HW)        # free view over contiguous (H, W)

    # Second parallel grid axis: split C2 across cores (megacore at small B).
    c2_splits = 2 if (C2 % 2 == 0 and (C2 // 2) % 8 == 0) else 1
    C2s = C2 // c2_splits

    # --- VMEM budget / scheduler hints ---------------------------------------
    act_b = jnp.dtype(x.dtype).itemsize
    mxu_b = jnp.dtype(mxu_dtype).itemsize
    vmem_est = (2 * C1 * HW * act_b                 # double-buffered input block
                + 2 * C2s * HW * act_b              # double-buffered output block
                + 2 * (C_ * C1 + C2s * 4 * C_) * mxu_b   # resident weights
                + 2 * (C_ + C2s) * 4                # biases
                + 4 * C_ * HW * mxu_b               # cat scratch
                + (8 * C_ * HW + 2 * C2s * HW) * 4)  # live f32 intermediates
    try:
        cap = int(0.7 * pltpu.get_tpu_info().vmem_capacity_bytes)
    except Exception:
        cap = 44 * 2**20                            # ~0.7 * 64 MiB (v7x per-TC)
    vmem_limit = max(4 * 2**20, min(cap, int(1.25 * vmem_est)))

    cost = pl.CostEstimate(
        flops=int(2 * B * HW * (C1 * C_ + 4 * C_ * C2)
                  + 3 * B * HW * C_ * 2 * (k - 1)),
        transcendentals=int(B * HW * (C_ + C2)),
        bytes_accessed=int(act_b * (B * C1 * HW + B * C2 * HW)
                           + mxu_b * (C_ * C1 + 4 * C_ * C2) + 4 * (C_ + C2)),
    )

    kernel = functools.partial(_sppf_kernel, H=H, W=W, k=k, mxu_dtype=mxu_dtype)
    out = pl.pallas_call(
        kernel,
        out_shape=jax.ShapeDtypeStruct((B, C2, HW), x.dtype),
        grid=(B, c2_splits),
        in_specs=[
            pl.BlockSpec((1, C1, HW), lambda b, c: (b, 0, 0)),   # per-image input
            pl.BlockSpec((C_, C1), lambda b, c: (0, 0)),         # cv1 weight
            pl.BlockSpec((C_, 1), lambda b, c: (0, 0)),          # cv1 bias
            pl.BlockSpec((C2s, 4 * C_), lambda b, c: (c, 0)),    # cv2 weight slice
            pl.BlockSpec((C2s, 1), lambda b, c: (c, 0)),         # cv2 bias slice
        ],
        out_specs=pl.BlockSpec((1, C2s, HW), lambda b, c: (b, c, 0)),
        scratch_shapes=[pltpu.VMEM((4 * C_, HW), mxu_dtype)],
        compiler_params=pltpu.CompilerParams(
            dimension_semantics=("parallel", "parallel"),
            vmem_limit_bytes=vmem_limit,
        ),
        cost_estimate=cost,
    )(x3, w1, b1, w2, b2)

    return out.reshape(B, C2, H, W)


def _sppf_reference(x, cv1_w, g1, be1, m1, v1, cv2_w, g2, be2, m2, v2, *, k=5, eps=1e-5):
    """Pure-JAX f32 reference matching the PyTorch SPPF (eval-mode BN)."""
    def conv_bn_silu(t, w, g, be, m, v):
        y = jnp.einsum('bchw,oc->bohw', t, w[:, :, 0, 0])
        inv = 1.0 / jnp.sqrt(v + eps)
        y = y * (g * inv)[None, :, None, None] + (be - g * m * inv)[None, :, None, None]
        return y * jax.nn.sigmoid(y)

    def maxpool(t):
        return jax.lax.reduce_window(
            t, -jnp.inf, jax.lax.max,
            window_dimensions=(1, 1, k, k), window_strides=(1, 1, 1, 1),
            padding=((0, 0), (0, 0), (k // 2, k // 2), (k // 2, k // 2)))

    xc = conv_bn_silu(x, cv1_w, g1, be1, m1, v1)
    y1 = maxpool(xc)
    y2 = maxpool(y1)
    y3 = maxpool(y2)
    cat = jnp.concatenate([xc, y1, y2, y3], axis=1)
    return conv_bn_silu(cat, cv2_w, g2, be2, m2, v2)


if __name__ == "__main__":
    # SPPF(c1=4, c2=32, k=5), input (B=2, C=4, H=16, W=16)
    B, C1, H, W = 2, 4, 16, 16
    C2 = 32
    C_ = C1 // 2
    k = 5

    key = jax.random.PRNGKey(0)
    keys = jax.random.split(key, 11)

    x = jax.random.normal(keys[0], (B, C1, H, W), dtype=jnp.float32)
    cv1_w = 0.3 * jax.random.normal(keys[1], (C_, C1, 1, 1), dtype=jnp.float32)
    bn1_g = 1.0 + 0.1 * jax.random.normal(keys[2], (C_,), dtype=jnp.float32)
    bn1_b = 0.1 * jax.random.normal(keys[3], (C_,), dtype=jnp.float32)
    bn1_m = 0.05 * jax.random.normal(keys[4], (C_,), dtype=jnp.float32)
    bn1_v = jnp.abs(1.0 + 0.1 * jax.random.normal(keys[5], (C_,), dtype=jnp.float32))

    cv2_w = 0.3 * jax.random.normal(keys[6], (C2, 4 * C_, 1, 1), dtype=jnp.float32)
    bn2_g = 1.0 + 0.1 * jax.random.normal(keys[7], (C2,), dtype=jnp.float32)
    bn2_b = 0.1 * jax.random.normal(keys[8], (C2,), dtype=jnp.float32)
    bn2_m = 0.05 * jax.random.normal(keys[9], (C2,), dtype=jnp.float32)
    bn2_v = jnp.abs(1.0 + 0.1 * jax.random.normal(keys[10], (C2,), dtype=jnp.float32))

    out = sppf_forward(x, cv1_w, bn1_g, bn1_b, bn1_m, bn1_v,
                       cv2_w, bn2_g, bn2_b, bn2_m, bn2_v, k=k)
    out = jax.block_until_ready(out)
    assert out.shape == (B, C2, H, W), out.shape

    ref = _sppf_reference(x, cv1_w, bn1_g, bn1_b, bn1_m, bn1_v,
                          cv2_w, bn2_g, bn2_b, bn2_m, bn2_v, k=k)
    ref = jax.block_until_ready(ref)

    # Kernel uses bf16 MXU operands (f32 accumulation), so compare against the
    # f32 reference with tolerances sized for bf16 operand rounding; these
    # still catch any structural (pooling / layout / mask) error by orders of
    # magnitude.
    err = jnp.abs(out - ref)
    max_err = float(jnp.max(err))
    rms_err = float(jnp.sqrt(jnp.mean(err * err)))
    assert max_err < 1e-1, f"max |pallas - reference| = {max_err}"
    assert rms_err < 2e-2, f"rms |pallas - reference| = {rms_err}"

    print("KERNEL_OK")
</pallas_src>

<mosaic_0001>
module attributes {stable_mosaic.version = 11 : i64} {
  func.func @_sppf_kernel(%arg0: i32, %arg1: i32, %arg2: memref<1x4x256xf32, #tpu.memory_space<vmem>>, %arg3: memref<2x4xbf16, #tpu.memory_space<vmem>>, %arg4: memref<2x1xf32, #tpu.memory_space<vmem>>, %arg5: memref<16x8xbf16, #tpu.memory_space<vmem>>, %arg6: memref<16x1xf32, #tpu.memory_space<vmem>>, %arg7: memref<1x16x256xf32, #tpu.memory_space<vmem>>, %arg8: memref<8x256xbf16, #tpu.memory_space<vmem>>) attributes {dimension_semantics = [#tpu.dimension_semantics<parallel>, #tpu.dimension_semantics<parallel>], iteration_bounds = array<i64: 2, 2>, scalar_prefetch = 0 : i64, scratch_operands = 1 : i64, tpu.core_type = #tpu.core_type<tc>, window_params = [{transform_indices = @transform_0, window_bounds = array<i64: 1, 4, 256>}, {pipeline_mode = #tpu.pipeline_mode<synchronous>, transform_indices = @transform_1, window_bounds = array<i64: 2, 4>}, {pipeline_mode = #tpu.pipeline_mode<synchronous>, transform_indices = @transform_2, window_bounds = array<i64: 2, 1>}, {transform_indices = @transform_3, window_bounds = array<i64: 16, 8>}, {transform_indices = @transform_4, window_bounds = array<i64: 16, 1>}, {transform_indices = @transform_5, window_bounds = array<i64: 1, 16, 256>}]} {
    %c0 = arith.constant 0 : index
    %c0_0 = arith.constant 0 : index
    %c0_1 = arith.constant 0 : index
    %0 = vector.load %arg2[%c0, %c0_0, %c0_1] : memref<1x4x256xf32, #tpu.memory_space<vmem>>, vector<1x4x256xf32>
    %1 = vector.shape_cast %0 : vector<1x4x256xf32> to vector<4x256xf32>
    %2 = arith.truncf %1 : vector<4x256xf32> to vector<4x256xbf16>
    %c0_2 = arith.constant 0 : index
    %c0_3 = arith.constant 0 : index
    %3 = vector.load %arg3[%c0_2, %c0_3] : memref<2x4xbf16, #tpu.memory_space<vmem>>, vector<2x4xbf16>
    %cst = arith.constant dense<0.000000e+00> : vector<2x256xf32>
    %4 = tpu.matmul %3, %2, %cst {dimension_numbers = #tpu.dot_dimension_numbers<[1], [0], [0], [1], [0, 0, 1, 1], [], []>} : vector<2x4xbf16>, vector<4x256xbf16>, vector<2x256xf32> -> vector<2x256xf32>
    %c0_4 = arith.constant 0 : index
    %c0_5 = arith.constant 0 : index
    %5 = vector.load %arg4[%c0_4, %c0_5] : memref<2x1xf32, #tpu.memory_space<vmem>>, vector<2x1xf32>
    %6 = vector.broadcast %5 : vector<2x1xf32> to vector<2x256xf32>
    %7 = arith.addf %4, %6 : vector<2x256xf32>
    %8 = arith.negf %7 : vector<2x256xf32>
    %9 = math.exp %8 : vector<2x256xf32>
    %cst_6 = arith.constant 1.000000e+00 : f32
    %10 = vector.broadcast %cst_6 : f32 to vector<2x256xf32>
    %11 = arith.addf %10, %9 : vector<2x256xf32>
    %12 = arith.divf %10, %11 : vector<2x256xf32>
    %13 = arith.mulf %7, %12 : vector<2x256xf32>
    %14 = tpu.iota {dimensions = array<i32: 1>} : vector<2x256xi32>
    %c16_i32 = arith.constant 16 : i32
    %c0_i32 = arith.constant 0 : i32
    %15 = arith.cmpi eq, %c16_i32, %c0_i32 : i32
    %c1_i32 = arith.constant 1 : i32
    %16 = arith.select %15, %c1_i32, %c16_i32 : i32
    %17 = vector.broadcast %16 : i32 to vector<2x256xi32>
    %18 = arith.remsi %14, %17 : vector<2x256xi32>
    %c0_i32_7 = arith.constant 0 : i32
    %19 = vector.broadcast %c0_i32_7 : i32 to vector<2x256xi32>
    %20 = arith.cmpi ne, %18, %19 : vector<2x256xi32>
    %c0_i32_8 = arith.constant 0 : i32
    %21 = vector.broadcast %c0_i32_8 : i32 to vector<2x256xi32>
    %22 = arith.cmpi slt, %18, %21 : vector<2x256xi32>
    %c0_i32_9 = arith.constant 0 : i32
    %23 = arith.cmpi slt, %16, %c0_i32_9 : i32
    %24 = vector.broadcast %23 : i1 to vector<2x256xi1>
    %25 = vector.broadcast %24 : vector<2x256xi1> to vector<2x256xi1>
    %26 = arith.xori %22, %25 : vector<2x256xi1>
    %27 = arith.andi %26, %20 : vector<2x256xi1>
    %28 = vector.broadcast %16 : i32 to vector<2x256xi32>
    %29 = arith.addi %18, %28 : vector<2x256xi32>
    %30 = arith.select %27, %29, %18 : vector<2x256xi1>, vector<2x256xi32>
    %31 = arith.truncf %13 : vector<2x256xf32> to vector<2x256xbf16>
    %c0_10 = arith.constant 0 : index
    %c0_11 = arith.constant 0 : index
    %32 = vector.load %arg8[%c0_10, %c0_11] : memref<8x256xbf16, #tpu.memory_space<vmem>>, vector<2x256xbf16>
    tpu.vector_store %arg8[%c0_10, %c0_11], %31 {strides = array<i32>} : memref<8x256xbf16, #tpu.memory_space<vmem>>, vector<2x256xbf16>,
    %c255_i32 = arith.constant 255 : i32
    %33 = tpu.dynamic_rotate %13 by %c255_i32 dim 1 : vector<2x256xf32>, i32 -> vector<2x256xf32>
    %c15_i32 = arith.constant 15 : i32
    %34 = vector.broadcast %c15_i32 : i32 to vector<2x256xi32>
    %35 = arith.cmpi slt, %30, %34 : vector<2x256xi32>
    %cst_12 = arith.constant -3.40282347E+38 : f32
    %36 = vector.broadcast %cst_12 : f32 to vector<2x256xf32>
    %37 = arith.select %35, %33, %36 : vector<2x256xi1>, vector<2x256xf32>
    %38 = arith.maximumf %13, %37 : vector<2x256xf32>
    %c1_i32_13 = arith.constant 1 : i32
    %39 = tpu.dynamic_rotate %13 by %c1_i32_13 dim 1 : vector<2x256xf32>, i32 -> vector<2x256xf32>
    %c1_i32_14 = arith.constant 1 : i32
    %40 = vector.broadcast %c1_i32_14 : i32 to vector<2x256xi32>
    %41 = arith.cmpi sge, %30, %40 : vector<2x256xi32>
    %cst_15 = arith.constant -3.40282347E+38 : f32
    %42 = vector.broadcast %cst_15 : f32 to vector<2x256xf32>
    %43 = arith.select %41, %39, %42 : vector<2x256xi1>, vector<2x256xf32>
    %44 = arith.maximumf %38, %43 : vector<2x256xf32>
    %c254_i32 = arith.constant 254 : i32
    %45 = tpu.dynamic_rotate %13 by %c254_i32 dim 1 : vector<2x256xf32>, i32 -> vector<2x256xf32>
    %c14_i32 = arith.constant 14 : i32
    %46 = vector.broadcast %c14_i32 : i32 to vector<2x256xi32>
    %47 = arith.cmpi slt, %30, %46 : vector<2x256xi32>
    %cst_16 = arith.constant -3.40282347E+38 : f32
    %48 = vector.broadcast %cst_16 : f32 to vector<2x256xf32>
    %49 = arith.select %47, %45, %48 : vector<2x256xi1>, vector<2x256xf32>
    %50 = arith.maximumf %44, %49 : vector<2x256xf32>
    %c2_i32 = arith.constant 2 : i32
    %51 = tpu.dynamic_rotate %13 by %c2_i32 dim 1 : vector<2x256xf32>, i32 -> vector<2x256xf32>
    %c2_i32_17 = arith.constant 2 : i32
    %52 = vector.broadcast %c2_i32_17 : i32 to vector<2x256xi32>
    %53 = arith.cmpi sge, %30, %52 : vector<2x256xi32>
    %cst_18 = arith.constant -3.40282347E+38 : f32
    %54 = vector.broadcast %cst_18 : f32 to vector<2x256xf32>
    %55 = arith.select %53, %51, %54 : vector<2x256xi1>, vector<2x256xf32>
    %56 = arith.maximumf %50, %55 : vector<2x256xf32>
    %c240_i32 = arith.constant 240 : i32
    %57 = tpu.dynamic_rotate %56 by %c240_i32 dim 1 : vector<2x256xf32>, i32 -> vector<2x256xf32>
    %c240_i32_19 = arith.constant 240 : i32
    %58 = vector.broadcast %c240_i32_19 : i32 to vector<2x256xi32>
    %59 = arith.cmpi slt, %14, %58 : vector<2x256xi32>
    %cst_20 = arith.constant -3.40282347E+38 : f32
    %60 = vector.broadcast %cst_20 : f32 to vector<2x256xf32>
    %61 = arith.select %59, %57, %60 : vector<2x256xi1>, vector<2x256xf32>
    %62 = arith.maximumf %56, %61 : vector<2x256xf32>
    %c16_i32_21 = arith.constant 16 : i32
    %63 = tpu.dynamic_rotate %56 by %c16_i32_21 dim 1 : vector<2x256xf32>, i32 -> vector<2x256xf32>
    %c16_i32_22 = arith.constant 16 : i32
    %64 = vector.broadcast %c16_i32_22 : i32 to vector<2x256xi32>
    %65 = arith.cmpi sge, %14, %64 : vector<2x256xi32>
    %cst_23 = arith.constant -3.40282347E+38 : f32
    %66 = vector.broadcast %cst_23 : f32 to vector<2x256xf32>
    %67 = arith.select %65, %63, %66 : vector<2x256xi1>, vector<2x256xf32>
    %68 = arith.maximumf %62, %67 : vector<2x256xf32>
    %c224_i32 = arith.constant 224 : i32
    %69 = tpu.dynamic_rotate %56 by %c224_i32 dim 1 : vector<2x256xf32>, i32 -> vector<2x256xf32>
    %c224_i32_24 = arith.constant 224 : i32
    %70 = vector.broadcast %c224_i32_24 : i32 to vector<2x256xi32>
    %71 = arith.cmpi slt, %14, %70 : vector<2x256xi32>
    %cst_25 = arith.constant -3.40282347E+38 : f32
    %72 = vector.broadcast %cst_25 : f32 to vector<2x256xf32>
    %73 = arith.select %71, %69, %72 : vector<2x256xi1>, vector<2x256xf32>
    %74 = arith.maximumf %68, %73 : vector<2x256xf32>
    %c32_i32 = arith.constant 32 : i32
    %75 = tpu.dynamic_rotate %56 by %c32_i32 dim 1 : vector<2x256xf32>, i32 -> vector<2x256xf32>
    %c32_i32_26 = arith.constant 32 : i32
    %76 = vector.broadcast %c32_i32_26 : i32 to vector<2x256xi32>
    %77 = arith.cmpi sge, %14, %76 : vector<2x256xi32>
    %cst_27 = arith.constant -3.40282347E+38 : f32
    %78 = vector.broadcast %cst_27 : f32 to vector<2x256xf32>
    %79 = arith.select %77, %75, %78 : vector<2x256xi1>, vector<2x256xf32>
    %80 = arith.maximumf %74, %79 : vector<2x256xf32>
    %81 = arith.truncf %80 : vector<2x256xf32> to vector<2x256xbf16>
    %c2 = arith.constant 2 : index
    %c0_28 = arith.constant 0 : index
    %82 = vector.load %arg8[%c2, %c0_28] : memref<8x256xbf16, #tpu.memory_space<vmem>>, vector<2x256xbf16>
    tpu.vector_store %arg8[%c2, %c0_28], %81 {strides = array<i32>} : memref<8x256xbf16, #tpu.memory_space<vmem>>, vector<2x256xbf16>,
    %c255_i32_29 = arith.constant 255 : i32
    %83 = tpu.dynamic_rotate %80 by %c255_i32_29 dim 1 : vector<2x256xf32>, i32 -> vector<2x256xf32>
    %c15_i32_30 = arith.constant 15 : i32
    %84 = vector.broadcast %c15_i32_30 : i32 to vector<2x256xi32>
    %85 = arith.cmpi slt, %30, %84 : vector<2x256xi32>
    %cst_31 = arith.constant -3.40282347E+38 : f32
    %86 = vector.broadcast %cst_31 : f32 to vector<2x256xf32>
    %87 = arith.select %85, %83, %86 : vector<2x256xi1>, vector<2x256xf32>
    %88 = arith.maximumf %80, %87 : vector<2x256xf32>
    %c1_i32_32 = arith.constant 1 : i32
    %89 = tpu.dynamic_rotate %80 by %c1_i32_32 dim 1 : vector<2x256xf32>, i32 -> vector<2x256xf32>
    %c1_i32_33 = arith.constant 1 : i32
    %90 = vector.broadcast %c1_i32_33 : i32 to vector<2x256xi32>
    %91 = arith.cmpi sge, %30, %90 : vector<2x256xi32>
    %cst_34 = arith.constant -3.40282347E+38 : f32
    %92 = vector.broadcast %cst_34 : f32 to vector<2x256xf32>
    %93 = arith.select %91, %89, %92 : vector<2x256xi1>, vector<2x256xf32>
    %94 = arith.maximumf %88, %93 : vector<2x256xf32>
    %c254_i32_35 = arith.constant 254 : i32
    %95 = tpu.dynamic_rotate %80 by %c254_i32_35 dim 1 : vector<2x256xf32>, i32 -> vector<2x256xf32>
    %c14_i32_36 = arith.constant 14 : i32
    %96 = vector.broadcast %c14_i32_36 : i32 to vector<2x256xi32>
    %97 = arith.cmpi slt, %30, %96 : vector<2x256xi32>
    %cst_37 = arith.constant -3.40282347E+38 : f32
    %98 = vector.broadcast %cst_37 : f32 to vector<2x256xf32>
    %99 = arith.select %97, %95, %98 : vector<2x256xi1>, vector<2x256xf32>
    %100 = arith.maximumf %94, %99 : vector<2x256xf32>
    %c2_i32_38 = arith.constant 2 : i32
    %101 = tpu.dynamic_rotate %80 by %c2_i32_38 dim 1 : vector<2x256xf32>, i32 -> vector<2x256xf32>
    %c2_i32_39 = arith.constant 2 : i32
    %102 = vector.broadcast %c2_i32_39 : i32 to vector<2x256xi32>
    %103 = arith.cmpi sge, %30, %102 : vector<2x256xi32>
    %cst_40 = arith.constant -3.40282347E+38 : f32
    %104 = vector.broadcast %cst_40 : f32 to vector<2x256xf32>
    %105 = arith.select %103, %101, %104 : vector<2x256xi1>, vector<2x256xf32>
    %106 = arith.maximumf %100, %105 : vector<2x256xf32>
    %c240_i32_41 = arith.constant 240 : i32
    %107 = tpu.dynamic_rotate %106 by %c240_i32_41 dim 1 : vector<2x256xf32>, i32 -> vector<2x256xf32>
    %c240_i32_42 = arith.constant 240 : i32
    %108 = vector.broadcast %c240_i32_42 : i32 to vector<2x256xi32>
    %109 = arith.cmpi slt, %14, %108 : vector<2x256xi32>
    %cst_43 = arith.constant -3.40282347E+38 : f32
    %110 = vector.broadcast %cst_43 : f32 to vector<2x256xf32>
    %111 = arith.select %109, %107, %110 : vector<2x256xi1>, vector<2x256xf32>
    %112 = arith.maximumf %106, %111 : vector<2x256xf32>
    %c16_i32_44 = arith.constant 16 : i32
    %113 = tpu.dynamic_rotate %106 by %c16_i32_44 dim 1 : vector<2x256xf32>, i32 -> vector<2x256xf32>
    %c16_i32_45 = arith.constant 16 : i32
    %114 = vector.broadcast %c16_i32_45 : i32 to vector<2x256xi32>
    %115 = arith.cmpi sge, %14, %114 : vector<2x256xi32>
    %cst_46 = arith.constant -3.40282347E+38 : f32
    %116 = vector.broadcast %cst_46 : f32 to vector<2x256xf32>
    %117 = arith.select %115, %113, %116 : vector<2x256xi1>, vector<2x256xf32>
    %118 = arith.maximumf %112, %117 : vector<2x256xf32>
    %c224_i32_47 = arith.constant 224 : i32
    %119 = tpu.dynamic_rotate %106 by %c224_i32_47 dim 1 : vector<2x256xf32>, i32 -> vector<2x256xf32>
    %c224_i32_48 = arith.constant 224 : i32
    %120 = vector.broadcast %c224_i32_48 : i32 to vector<2x256xi32>
    %121 = arith.cmpi slt, %14, %120 : vector<2x256xi32>
    %cst_49 = arith.constant -3.40282347E+38 : f32
    %122 = vector.broadcast %cst_49 : f32 to vector<2x256xf32>
    %123 = arith.select %121, %119, %122 : vector<2x256xi1>, vector<2x256xf32>
    %124 = arith.maximumf %118, %123 : vector<2x256xf32>
    %c32_i32_50 = arith.constant 32 : i32
    %125 = tpu.dynamic_rotate %106 by %c32_i32_50 dim 1 : vector<2x256xf32>, i32 -> vector<2x256xf32>
    %c32_i32_51 = arith.constant 32 : i32
    %126 = vector.broadcast %c32_i32_51 : i32 to vector<2x256xi32>
    %127 = arith.cmpi sge, %14, %126 : vector<2x256xi32>
    %cst_52 = arith.constant -3.40282347E+38 : f32
    %128 = vector.broadcast %cst_52 : f32 to vector<2x256xf32>
    %129 = arith.select %127, %125, %128 : vector<2x256xi1>, vector<2x256xf32>
    %130 = arith.maximumf %124, %129 : vector<2x256xf32>
    %131 = arith.truncf %130 : vector<2x256xf32> to vector<2x256xbf16>
    %c4 = arith.constant 4 : index
    %c0_53 = arith.constant 0 : index
    %132 = vector.load %arg8[%c4, %c0_53] : memref<8x256xbf16, #tpu.memory_space<vmem>>, vector<2x256xbf16>
    tpu.vector_store %arg8[%c4, %c0_53], %131 {strides = array<i32>} : memref<8x256xbf16, #tpu.memory_space<vmem>>, vector<2x256xbf16>,
    %c255_i32_54 = arith.constant 255 : i32
    %133 = tpu.dynamic_rotate %130 by %c255_i32_54 dim 1 : vector<2x256xf32>, i32 -> vector<2x256xf32>
    %c15_i32_55 = arith.constant 15 : i32
    %134 = vector.broadcast %c15_i32_55 : i32 to vector<2x256xi32>
    %135 = arith.cmpi slt, %30, %134 : vector<2x256xi32>
    %cst_56 = arith.constant -3.40282347E+38 : f32
    %136 = vector.broadcast %cst_56 : f32 to vector<2x256xf32>
    %137 = arith.select %135, %133, %136 : vector<2x256xi1>, vector<2x256xf32>
    %138 = arith.maximumf %130, %137 : vector<2x256xf32>
    %c1_i32_57 = arith.constant 1 : i32
    %139 = tpu.dynamic_rotate %130 by %c1_i32_57 dim 1 : vector<2x256xf32>, i32 -> vector<2x256xf32>
    %c1_i32_58 = arith.constant 1 : i32
    %140 = vector.broadcast %c1_i32_58 : i32 to vector<2x256xi32>
    %141 = arith.cmpi sge, %30, %140 : vector<2x256xi32>
    %cst_59 = arith.constant -3.40282347E+38 : f32
    %142 = vector.broadcast %cst_59 : f32 to vector<2x256xf32>
    %143 = arith.select %141, %139, %142 : vector<2x256xi1>, vector<2x256xf32>
    %144 = arith.maximumf %138, %143 : vector<2x256xf32>
    %c254_i32_60 = arith.constant 254 : i32
    %145 = tpu.dynamic_rotate %130 by %c254_i32_60 dim 1 : vector<2x256xf32>, i32 -> vector<2x256xf32>
    %c14_i32_61 = arith.constant 14 : i32
    %146 = vector.broadcast %c14_i32_61 : i32 to vector<2x256xi32>
    %147 = arith.cmpi slt, %30, %146 : vector<2x256xi32>
    %cst_62 = arith.constant -3.40282347E+38 : f32
    %148 = vector.broadcast %cst_62 : f32 to vector<2x256xf32>
    %149 = arith.select %147, %145, %148 : vector<2x256xi1>, vector<2x256xf32>
    %150 = arith.maximumf %144, %149 : vector<2x256xf32>
    %c2_i32_63 = arith.constant 2 : i32
    %151 = tpu.dynamic_rotate %130 by %c2_i32_63 dim 1 : vector<2x256xf32>, i32 -> vector<2x256xf32>
    %c2_i32_64 = arith.constant 2 : i32
    %152 = vector.broadcast %c2_i32_64 : i32 to vector<2x256xi32>
    %153 = arith.cmpi sge, %30, %152 : vector<2x256xi32>
    %cst_65 = arith.constant -3.40282347E+38 : f32
    %154 = vector.broadcast %cst_65 : f32 to vector<2x256xf32>
    %155 = arith.select %153, %151, %154 : vector<2x256xi1>, vector<2x256xf32>
    %156 = arith.maximumf %150, %155 : vector<2x256xf32>
    %c240_i32_66 = arith.constant 240 : i32
    %157 = tpu.dynamic_rotate %156 by %c240_i32_66 dim 1 : vector<2x256xf32>, i32 -> vector<2x256xf32>
    %c240_i32_67 = arith.constant 240 : i32
    %158 = vector.broadcast %c240_i32_67 : i32 to vector<2x256xi32>
    %159 = arith.cmpi slt, %14, %158 : vector<2x256xi32>
    %cst_68 = arith.constant -3.40282347E+38 : f32
    %160 = vector.broadcast %cst_68 : f32 to vector<2x256xf32>
    %161 = arith.select %159, %157, %160 : vector<2x256xi1>, vector<2x256xf32>
    %162 = arith.maximumf %156, %161 : vector<2x256xf32>
    %c16_i32_69 = arith.constant 16 : i32
    %163 = tpu.dynamic_rotate %156 by %c16_i32_69 dim 1 : vector<2x256xf32>, i32 -> vector<2x256xf32>
    %c16_i32_70 = arith.constant 16 : i32
    %164 = vector.broadcast %c16_i32_70 : i32 to vector<2x256xi32>
    %165 = arith.cmpi sge, %14, %164 : vector<2x256xi32>
    %cst_71 = arith.constant -3.40282347E+38 : f32
    %166 = vector.broadcast %cst_71 : f32 to vector<2x256xf32>
    %167 = arith.select %165, %163, %166 : vector<2x256xi1>, vector<2x256xf32>
    %168 = arith.maximumf %162, %167 : vector<2x256xf32>
    %c224_i32_72 = arith.constant 224 : i32
    %169 = tpu.dynamic_rotate %156 by %c224_i32_72 dim 1 : vector<2x256xf32>, i32 -> vector<2x256xf32>
    %c224_i32_73 = arith.constant 224 : i32
    %170 = vector.broadcast %c224_i32_73 : i32 to vector<2x256xi32>
    %171 = arith.cmpi slt, %14, %170 : vector<2x256xi32>
    %cst_74 = arith.constant -3.40282347E+38 : f32
    %172 = vector.broadcast %cst_74 : f32 to vector<2x256xf32>
    %173 = arith.select %171, %169, %172 : vector<2x256xi1>, vector<2x256xf32>
    %174 = arith.maximumf %168, %173 : vector<2x256xf32>
    %c32_i32_75 = arith.constant 32 : i32
    %175 = tpu.dynamic_rotate %156 by %c32_i32_75 dim 1 : vector<2x256xf32>, i32 -> vector<2x256xf32>
    %c32_i32_76 = arith.constant 32 : i32
    %176 = vector.broadcast %c32_i32_76 : i32 to vector<2x256xi32>
    %177 = arith.cmpi sge, %14, %176 : vector<2x256xi32>
    %cst_77 = arith.constant -3.40282347E+38 : f32
    %178 = vector.broadcast %cst_77 : f32 to vector<2x256xf32>
    %179 = arith.select %177, %175, %178 : vector<2x256xi1>, vector<2x256xf32>
    %180 = arith.maximumf %174, %179 : vector<2x256xf32>
    %181 = arith.truncf %180 : vector<2x256xf32> to vector<2x256xbf16>
    %c6 = arith.constant 6 : index
    %c0_78 = arith.constant 0 : index
    %182 = vector.load %arg8[%c6, %c0_78] : memref<8x256xbf16, #tpu.memory_space<vmem>>, vector<2x256xbf16>
    tpu.vector_store %arg8[%c6, %c0_78], %181 {strides = array<i32>} : memref<8x256xbf16, #tpu.memory_space<vmem>>, vector<2x256xbf16>,
    %c0_79 = arith.constant 0 : index
    %c0_80 = arith.constant 0 : index
    %183 = vector.load %arg5[%c0_79, %c0_80] : memref<16x8xbf16, #tpu.memory_space<vmem>>, vector<16x8xbf16>
    %c0_81 = arith.constant 0 : index
    %c0_82 = arith.constant 0 : index
    %184 = vector.load %arg8[%c0_81, %c0_82] : memref<8x256xbf16, #tpu.memory_space<vmem>>, vector<8x256xbf16>
    %cst_83 = arith.constant dense<0.000000e+00> : vector<16x256xf32>
    %185 = tpu.matmul %183, %184, %cst_83 {dimension_numbers = #tpu.dot_dimension_numbers<[1], [0], [0], [1], [0, 0, 1, 1], [], []>} : vector<16x8xbf16>, vector<8x256xbf16>, vector<16x256xf32> -> vector<16x256xf32>
    %c0_84 = arith.constant 0 : index
    %c0_85 = arith.constant 0 : index
    %186 = vector.load %arg6[%c0_84, %c0_85] : memref<16x1xf32, #tpu.memory_space<vmem>>, vector<16x1xf32>
    %187 = vector.broadcast %186 : vector<16x1xf32> to vector<16x256xf32>
    %188 = arith.addf %185, %187 : vector<16x256xf32>
    %189 = arith.negf %188 : vector<16x256xf32>
    %190 = math.exp %189 : vector<16x256xf32>
    %cst_86 = arith.constant 1.000000e+00 : f32
    %191 = vector.broadcast %cst_86 : f32 to vector<16x256xf32>
    %192 = arith.addf %191, %190 : vector<16x256xf32>
    %193 = arith.divf %191, %192 : vector<16x256xf32>
    %194 = arith.mulf %188, %193 : vector<16x256xf32>
    %c0_87 = arith.constant 0 : index
    %c0_88 = arith.constant 0 : index
    %c0_89 = arith.constant 0 : index
    %195 = vector.load %arg7[%c0_87, %c0_88, %c0_89] : memref<1x16x256xf32, #tpu.memory_space<vmem>>, vector<1x16x256xf32>
    %196 = vector.shape_cast %195 : vector<1x16x256xf32> to vector<16x256xf32>
    %197 = vector.shape_cast %194 : vector<16x256xf32> to vector<1x16x256xf32>
    tpu.vector_store %arg7[%c0_87, %c0_88, %c0_89], %197 {strides = array<i32>} : memref<1x16x256xf32, #tpu.memory_space<vmem>>, vector<1x16x256xf32>,
    return
  }
  func.func @transform_0(%arg0: i32, %arg1: i32) -> (i32, i32, i32) {
    %c0_i32 = arith.constant 0 : i32
    %c0_i32_0 = arith.constant 0 : i32
    %c0_i32_1 = arith.constant 0 : i32
    return %arg0, %c0_i32, %c0_i32_0 : i32, i32, i32
  }
  func.func @transform_1(%arg0: i32, %arg1: i32) -> (i32, i32) {
    %c0_i32 = arith.constant 0 : i32
    %c0_i32_0 = arith.constant 0 : i32
    %c0_i32_1 = arith.constant 0 : i32
    return %c0_i32, %c0_i32_0 : i32, i32
  }
  func.func @transform_2(%arg0: i32, %arg1: i32) -> (i32, i32) {
    %c0_i32 = arith.constant 0 : i32
    %c0_i32_0 = arith.constant 0 : i32
    %c0_i32_1 = arith.constant 0 : i32
    return %c0_i32, %c0_i32_0 : i32, i32
  }
  func.func @transform_3(%arg0: i32, %arg1: i32) -> (i32, i32) {
    %c0_i32 = arith.constant 0 : i32
    %c0_i32_0 = arith.constant 0 : i32
    return %arg1, %c0_i32 : i32, i32
  }
  func.func @transform_4(%arg0: i32, %arg1: i32) -> (i32, i32) {
    %c0_i32 = arith.constant 0 : i32
    %c0_i32_0 = arith.constant 0 : i32
    return %arg1, %c0_i32 : i32, i32
  }
  func.func @transform_5(%arg0: i32, %arg1: i32) -> (i32, i32, i32) {
    %c0_i32 = arith.constant 0 : i32
    %c0_i32_0 = arith.constant 0 : i32
    return %arg0, %arg1, %c0_i32 : i32, i32, i32
  }
}

</mosaic_0001>

<llo_original>
// kernel: tpu_custom_call.1
$region0: #{tpu_custom_call.1}
  #allocation0 [shape = 'u32[]', space=smem, size = 0x4, offset = 0x4, fixed_abs, tag = 'smem constant byte address 0x4 - core index']
  #allocation1 [shape = 'u32[144,128]{1,0:T(1,128)}', space=vmem, size = 0x12000, scoped, tag = 'internal scratch']
  #allocation2 [shape = 'bf16[8,256]{1,0:T(8,128)(2,1)}', space=vmem, size = 0x1000, scoped, tag = 'scratch operand']
  %s0 = inlined_call_operand.vmem [shape: f32[2,4,256], index: 0, kind: input, shape index: {}]
  %s1 = inlined_call_operand.vmem [shape: bf16[2,4], index: 1, kind: input, shape index: {}]
  %s2 = inlined_call_operand.vmem [shape: f32[2,1], index: 2, kind: input, shape index: {}]
  %s3 = inlined_call_operand.vmem [shape: bf16[32,8], index: 3, kind: input, shape index: {}]
  %s4 = inlined_call_operand.vmem [shape: f32[32,1], index: 4, kind: input, shape index: {}]
  %s5 = inlined_call_operand.hbm [shape: f32[2,32,256], index: 5, kind: output, shape index: {}]
  %s6 = sld [smem:[#allocation0]]
  $region53: #{tpu_custom_call.1} parent=0
    _
  %s8 = ssub.s32 1, %s6
  %s9 = scalar_select 0, %s8, %s6
  $region1: #{tpu_custom_call.1} parent=0
    #allocation3 [shape = 'u8[32768]{0}', space=vmem, size = 0x8000, scoped, tag = 'output window, operand 0']
    #allocation4 [shape = 's32[2]{0}', space=sflag, size = 0x8, scoped, tag = 'scoped memory for tpu_custom_call.1']
    %10 = vsyncpa [#allocation4], 0
    %s11 = scalar_lea.sflag [#allocation4], 1
    %12 = vsyncpa %s11, 0
    loop: start=0, step=1, limit=6
    $region2: #{tpu_custom_call.1} parent=1 // loop_pre_header
      _
    $region3: #{tpu_custom_call.1} parent=1 // loop_header
      %s14 = sphi 0, %s18
      %p15 = scmp.ge.s32.totalorder %s14, 6
      %s21 = sphi 0, %s33
      %s22 = sphi 0, %s29
      %s23 = sphi 0, %s21
      %s24 = sphi 0, %s22
      %s25 = sphi 0, %s23
      %s26 = sphi 0, %s24
      %s36 = sphi 0, %s38
      %s39 = sphi 0, %s36
      %s40 = sphi 0, %s39
      %s56 = sphi 0, %s40
      %s60 = sphi 0, %s60
      %s62 = sphi 0, %s60
      %s63 = sphi 0, %s62
      %s77 = sphi 0, %s63
      %s81 = sphi 0, %s81
      %s83 = sphi 0, %s81
      %s84 = sphi 0, %s83
      %s98 = sphi 0, %s84
      %s104 = sphi 0, %s106
      %s107 = sphi 0, %s104
      %s108 = sphi 0, %s107
      %s124 = sphi 0, %s108
      %s130 = sphi 0, %s132
      %s133 = sphi 0, %s130
      %s134 = sphi 0, %s133
      %s150 = sphi 0, %s134
      %s158 = sphi 0, %s160
      %s161 = sphi 0, %s158
      %s162 = sphi 0, %s161
      %s178 = sphi 0, %s162
    $region4: #{tpu_custom_call.1} parent=1 // loop_header_branch
      %17 = sbr.rel (%p15) target = $region8
    $region5: #{tpu_custom_call.1} parent=1 // loop_body
      %s19 = ssub.s32 %s14, 1
      %s20 = ssub.s32 %s14, 2
      %s27 = sadd.s32 1, %s22
      %p28 = scmp.ge.s32.totalorder %s27, 2
      %s29 = scalar_select %p28, 0, %s27
      %s30 = sadd.s32 1, %s21
      %s31 = scalar_select %p28, %s30, %s21
      %p32 = scmp.ge.s32.totalorder %s31, 2
      %s33 = scalar_select %p32, 0, %s31
      %s34 = ssub.s32 %s21, %s33
      %p35 = scmp.eq.s32.totalorder %s34, 0
      %s37 = sadd.s32 %s36, 1
      %s38 = scalar_select %p35, %s36, %s37
      %p41 = pneg %p35
      %p42 = scmp.eq.s32.totalorder %s14, 3
      %p43 = por %p41, %p42
      %p44 = scmp.ne.s32.totalorder %s36, %s39
      %p45 = scmp.eq.s32.totalorder %s14, 0
      %p46 = por %p44, %p45
      %p47 = scmp.ne.s32.totalorder %s36, %s39
      %p48 = scmp.eq.s32.totalorder %s19, 3
      %p49 = por %p47, %p48
      %p50 = scmp.ne.s32.totalorder %s39, %s40
      %p51 = scmp.eq.s32.totalorder %s19, 0
      %p52 = por %p50, %p51
      %p53 = scmp.ne.s32.totalorder %s39, %s40
      %p54 = scmp.eq.s32.totalorder %s20, 3
      %p55 = por %p53, %p54
      %p57 = scmp.ne.s32.totalorder %s40, %s56
      %p58 = scmp.eq.s32.totalorder %s20, 0
      %p59 = por %p57, %p58
      %s61 = sadd.s32 %s60, 1
      %p64 = scmp.eq.s32.totalorder %s14, 3
      %p65 = scmp.ne.s32.totalorder %s60, %s62
      %p66 = scmp.eq.s32.totalorder %s14, 0
      %p67 = por %p65, %p66
      %p68 = scmp.ne.s32.totalorder %s60, %s62
      %p69 = scmp.eq.s32.totalorder %s19, 3
      %p70 = por %p68, %p69
      %p71 = scmp.ne.s32.totalorder %s62, %s63
      %p72 = scmp.eq.s32.totalorder %s19, 0
      %p73 = por %p71, %p72
      %p74 = scmp.ne.s32.totalorder %s62, %s63
      %p75 = scmp.eq.s32.totalorder %s20, 3
      %p76 = por %p74, %p75
      %p78 = scmp.ne.s32.totalorder %s63, %s77
      %p79 = scmp.eq.s32.totalorder %s20, 0
      %p80 = por %p78, %p79
      %s82 = sadd.s32 %s81, 1
      %p85 = scmp.eq.s32.totalorder %s14, 3
      %p86 = scmp.ne.s32.totalorder %s81, %s83
      %p87 = scmp.eq.s32.totalorder %s14, 0
      %p88 = por %p86, %p87
      %p89 = scmp.ne.s32.totalorder %s81, %s83
      %p90 = scmp.eq.s32.totalorder %s19, 3
      %p91 = por %p89, %p90
      %p92 = scmp.ne.s32.totalorder %s83, %s84
      %p93 = scmp.eq.s32.totalorder %s19, 0
      %p94 = por %p92, %p93
      %p95 = scmp.ne.s32.totalorder %s83, %s84
      %p96 = scmp.eq.s32.totalorder %s20, 3
      %p97 = por %p95, %p96
      %p99 = scmp.ne.s32.totalorder %s84, %s98
      %p100 = scmp.eq.s32.totalorder %s20, 0
      %p101 = por %p99, %p100
      %s102 = ssub.s32 %s22, %s29
      %p103 = scmp.eq.s32.totalorder %s102, 0
      %s105 = sadd.s32 %s104, 1
      %s106 = scalar_select %p103, %s104, %s105
      %p109 = pneg %p103
      %p110 = scmp.eq.s32.totalorder %s14, 3
      %p111 = por %p109, %p110
      %p112 = scmp.ne.s32.totalorder %s104, %s107
      %p113 = scmp.eq.s32.totalorder %s14, 0
      %p114 = por %p112, %p113
      %p115 = scmp.ne.s32.totalorder %s104, %s107
      %p116 = scmp.eq.s32.totalorder %s19, 3
      %p117 = por %p115, %p116
      %p118 = scmp.ne.s32.totalorder %s107, %s108
      %p119 = scmp.eq.s32.totalorder %s19, 0
      %p120 = por %p118, %p119
      %p121 = scmp.ne.s32.totalorder %s107, %s108
      %p122 = scmp.eq.s32.totalorder %s20, 3
      %p123 = por %p121, %p122
      %p125 = scmp.ne.s32.totalorder %s108, %s124
      %p126 = scmp.eq.s32.totalorder %s20, 0
      %p127 = por %p125, %p126
      %s128 = ssub.s32 %s22, %s29
      %p129 = scmp.eq.s32.totalorder %s128, 0
      %s131 = sadd.s32 %s130, 1
      %s132 = scalar_select %p129, %s130, %s131
      %p135 = pneg %p129
      %p136 = scmp.eq.s32.totalorder %s14, 3
      %p137 = por %p135, %p136
      %p138 = scmp.ne.s32.totalorder %s130, %s133
      %p139 = scmp.eq.s32.totalorder %s14, 0
      %p140 = por %p138, %p139
      %p141 = scmp.ne.s32.totalorder %s130, %s133
      %p142 = scmp.eq.s32.totalorder %s19, 3
      %p143 = por %p141, %p142
      %p144 = scmp.ne.s32.totalorder %s133, %s134
      %p145 = scmp.eq.s32.totalorder %s19, 0
      %p146 = por %p144, %p145
      %p147 = scmp.ne.s32.totalorder %s133, %s134
      %p148 = scmp.eq.s32.totalorder %s20, 3
      %p149 = por %p147, %p148
      %p151 = scmp.ne.s32.totalorder %s134, %s150
      %p152 = scmp.eq.s32.totalorder %s20, 0
      %p153 = por %p151, %p152
      %s154 = ssub.s32 %s21, %s33
      %s155 = ssub.s32 %s22, %s29
      %s156 = sor.u32 %s154, %s155
      %p157 = scmp.eq.s32.totalorder %s156, 0
      %s159 = sadd.s32 %s158, 1
      %s160 = scalar_select %p157, %s158, %s159
      %p163 = pneg %p157
      %p164 = scmp.eq.s32.totalorder %s14, 3
      %p165 = por %p163, %p164
      %p166 = scmp.ne.s32.totalorder %s158, %s161
      %p167 = scmp.eq.s32.totalorder %s14, 0
      %p168 = por %p166, %p167
      %p169 = scmp.ne.s32.totalorder %s158, %s161
      %p170 = scmp.eq.s32.totalorder %s19, 3
      %p171 = por %p169, %p170
      %p172 = scmp.ne.s32.totalorder %s161, %s162
      %p173 = scmp.eq.s32.totalorder %s19, 0
      %p174 = por %p172, %p173
      %p175 = scmp.ne.s32.totalorder %s161, %s162
      %p176 = scmp.eq.s32.totalorder %s20, 3
      %p177 = por %p175, %p176
      %p179 = scmp.ne.s32.totalorder %s162, %s178
      %p180 = scmp.eq.s32.totalorder %s20, 0
      %p181 = por %p179, %p180
      %p182 = scmp.le.s32.totalorder 1, %s14
      %p183 = scmp.lt.s32.totalorder %s14, 5
      %p184 = pnand %p182, %p183
      %p185 = pneg %p184
      // Predicated region
      $region9: #{tpu_custom_call.1} parent=5 // pred_check
        _
      $region10: #{tpu_custom_call.1} parent=5 // pred_check_branch
        %187 = sbr.rel (%p184) target = $region12
      $region11: #{tpu_custom_call.1} parent=5 // pred_region
        %s188 = ssub.s32 %s14, 1
        // Predicated region
        $region13: #{tpu_custom_call.1} parent=11 // pred_check
          %p189 = pneg %p73
        $region14: #{tpu_custom_call.1} parent=11 // pred_check_branch
          %191 = sbr.rel (%p189) target = $region16
        $region15: #{tpu_custom_call.1} parent=11 // pred_region
          _
        $region16: #{tpu_custom_call.1} parent=11 // pred_fallthru
          _
        // Predicated region
        $region17: #{tpu_custom_call.1} parent=11 // pred_check
          %p192 = pneg %p94
        $region18: #{tpu_custom_call.1} parent=11 // pred_check_branch
          %194 = sbr.rel (%p192) target = $region20
        $region19: #{tpu_custom_call.1} parent=11 // pred_region
          _
        $region20: #{tpu_custom_call.1} parent=11 // pred_fallthru
          _
      $region12: #{tpu_custom_call.1} parent=5 // pred_fallthru
        _
      %p195 = scmp.lt.s32.totalorder %s14, 4
      // Predicated region
      $region21: #{tpu_custom_call.1} parent=5 // pred_check
        %p196 = pneg %p195
      $region22: #{tpu_custom_call.1} parent=5 // pred_check_branch
        %198 = sbr.rel (%p196) target = $region24
      $region23: #{tpu_custom_call.1} parent=5 // pred_region
        // Predicated region
        $region25: #{tpu_custom_call.1} parent=23 // pred_check
          %p199 = pneg %p46
        $region26: #{tpu_custom_call.1} parent=23 // pred_check_branch
          %201 = sbr.rel (%p199) target = $region28
        $region27: #{tpu_custom_call.1} parent=23 // pred_region
          %p202 = scmp.lt.s32.totalorder %s21, 1
          %s203 = scalar_select %p202, %s21, 1
          %s204 = smul.addr %s203, 2
          %s205 = smul.addr %s204, 4
          %s206 = scalar_lea.vmem %s0, %s205
        $region28: #{tpu_custom_call.1} parent=23 // pred_fallthru
          _
        // Predicated region
        $region29: #{tpu_custom_call.1} parent=23 // pred_check
          %p207 = pneg %p114
        $region30: #{tpu_custom_call.1} parent=23 // pred_check_branch
          %209 = sbr.rel (%p207) target = $region32
        $region31: #{tpu_custom_call.1} parent=23 // pred_region
          %s210 = smul.u32 2, %s22
          %p211 = scmp.lt.s32.totalorder %s210, 3
          %s212 = scalar_select %p211, %s210, 3
          %s213 = smul.addr %s212, 4
          %s214 = scalar_lea.vmem %s3, %s213
          %s215 = smul.u32 2, %s22
        $region32: #{tpu_custom_call.1} parent=23 // pred_fallthru
          _
        // Predicated region
        $region33: #{tpu_custom_call.1} parent=23 // pred_check
          %p216 = pneg %p140
        $region34: #{tpu_custom_call.1} parent=23 // pred_check_branch
          %218 = sbr.rel (%p216) target = $region36
        $region35: #{tpu_custom_call.1} parent=23 // pred_region
          %s219 = smul.u32 2, %s22
          %p220 = scmp.lt.s32.totalorder %s219, 3
          %s221 = scalar_select %p220, %s219, 3
          %s222 = smul.addr %s221, 8
          %s223 = scalar_lea.vmem %s4, %s222
          %s224 = smul.u32 2, %s22
        $region36: #{tpu_custom_call.1} parent=23 // pred_fallthru
          _
      $region24: #{tpu_custom_call.1} parent=5 // pred_fallthru
        _
      %p225 = scmp.le.s32.totalorder 1, %s14
      %p226 = scmp.lt.s32.totalorder %s14, 5
      %p227 = pnand %p225, %p226
      %p228 = pneg %p227
      // Predicated region
      $region37: #{tpu_custom_call.1} parent=5 // pred_check
        _
      $region38: #{tpu_custom_call.1} parent=5 // pred_check_branch
        %230 = sbr.rel (%p227) target = $region40
      $region39: #{tpu_custom_call.1} parent=5 // pred_region
        %s231 = ssub.s32 %s14, 1
        %p232 = scmp.lt.s32.totalorder %s23, 1
        %s233 = scalar_select %p232, %s23, 1
        %s234 = smul.addr %s233, 2
        %s235 = smul.addr %s234, 4
        %s236 = scalar_lea.vmem %s0, %s235
        %p237 = pneg %p52
        %p238 = pneg %p49
        %p239 = pneg %p73
        %p240 = pneg %p70
        %p241 = pneg %p94
        %p242 = pneg %p91
        %s243 = smul.u32 2, %s24
        %p244 = scmp.lt.s32.totalorder %s243, 3
        %s245 = scalar_select %p244, %s243, 3
        %s246 = smul.addr %s245, 4
        %s247 = scalar_lea.vmem %s3, %s246
        %p248 = pneg %p120
        %p249 = pneg %p117
        %s250 = smul.u32 2, %s24
        %p251 = scmp.lt.s32.totalorder %s250, 3
        %s252 = scalar_select %p251, %s250, 3
        %s253 = smul.addr %s252, 8
        %s254 = scalar_lea.vmem %s4, %s253
        %p255 = pneg %p146
        %p256 = pneg %p143
        %p257 = pneg %p174
        %p258 = pneg %p171
        %s259 = sand.u32 %s161, 1
        %s260 = scalar_lea.sflag [#allocation4], %s259
        %s261 = sand.u32 %s161, 1
        %s262 = smul.addr %s261, 32
        %s263 = scalar_lea.vmem [#allocation3], %s262
        %p264 = scmp.lt.s32.totalorder %s23, 1
        %s265 = scalar_select %p264, %s23, 1
        %s266 = smul.addr %s265, 2
        %s267 = smul.addr %s266, 4
        %s268 = scalar_lea.vmem %s0, %s267
        %s269 = smul.u32 2, %s24
        %p270 = scmp.lt.s32.totalorder %s269, 3
        %s271 = scalar_select %p270, %s269, 3
        %s272 = smul.addr %s271, 4
        %s273 = scalar_lea.vmem %s3, %s272
        %s274 = smul.u32 2, %s24
        %s275 = smul.u32 2, %s24
        %p276 = scmp.lt.s32.totalorder %s275, 3
        %s277 = scalar_select %p276, %s275, 3
        %s278 = smul.addr %s277, 8
        %s279 = scalar_lea.vmem %s4, %s278
        %s280 = smul.u32 2, %s24
        %s281 = smul.u32 2, %s24
        %v283 = vld [vmem:[%s268] sm:$0xff]
        %v285 = vcombine.high %v283, %v283
        %v287 = vpack.c.bf16 %v283, %v283
        %v288 = vpack.c.bf16 %v285, %v285
        %v289 = vld [vmem:[%s1] sm:$0x1]
        %v290 = vld [vmem:[%s2] sm:$0x3]
        %292 = vset.pattern.permute.xlu0 0
        %293 = vperm.xlu0 %292, %v290
        %v294 = vpop.permute.xlu0 %293
        %vm296 = vcmask 31744
        %v298 = vsel %vm296, %v289, 0
        %vm300 = vcmask 1041408
        %v302 = vsel %vm300, %v287, 0
        %v305 = vsel %vm300, %v288, 0
        %307 = vmatprep.subr.bf16.mxu0 0
        %308 = vmatpush1.bf16.msra.mxu0 0
        %309 = vmatprep.subr.bf16.mxu0 0
        %310 = vmatpush1.bf16.msra.mxu0 0
        %311 = vmatprep.subr.bf16.mxu0 0
        %312 = vmatpush1.bf16.msra.mxu0 0
        %313 = vmatprep.subr.bf16.mxu0 0
        %314 = vmatpush1.bf16.msra.mxu0 0
        %315 = vmatprep.subr.bf16.mxu0 0
        %316 = vmatpush1.bf16.msra.mxu0 0
        %317 = vmatprep.subr.bf16.mxu0 0
        %318 = vmatpush1.bf16.msra.mxu0 0
        %319 = vmatprep.subr.bf16.mxu0 0
        %320 = vmatpush1.bf16.msra.mxu0 0
        %321 = vmatprep.subr.bf16.mxu0 %v305
        %322 = vmatpush1.bf16.msra.mxu0 %v302
        %323 = vmatprep.subr.bf16.mxu0 0
        %324 = vmatpush2.bf16.msra.mxu0 0
        %325 = vmatprep.subr.bf16.mxu0 0
        %326 = vmatpush2.bf16.msra.mxu0 0
        %327 = vmatprep.subr.bf16.mxu0 0
        %328 = vmatpush2.bf16.msra.mxu0 0
        %329 = vmatprep.subr.bf16.mxu0 0
        %330 = vmatpush2.bf16.msra.mxu0 0
        %331 = vmatprep.subr.bf16.mxu0 0
        %332 = vmatpush2.bf16.msra.mxu0 0
        %333 = vmatprep.subr.bf16.mxu0 0
        %334 = vmatpush2.bf16.msra.mxu0 0
        %335 = vmatprep.subr.bf16.mxu0 0
        %336 = vmatpush2.bf16.msra.mxu0 0
        %337 = vmatprep.subr.bf16.mxu0 0
        %338 = vmatpush2.bf16.msra.mxu0 0
        %339 = vmatprep.mubr.bf16.mxu0 0
        %340 = vmatmul.mubr.bf16.gmra.mxu0 %v298
        %v341 = vpop.f32.mrf.mxu0
        %v342 = vadd.f32 %v294, %v341
        %v343 = vpop.f32.mrf.mxu0
        %v344 = vadd.f32 %v294, %v343
        %v345 = vpop.f32.mrf.mxu0
        %v346 = vpop.f32.mrf.mxu0
        %347 = vdwg.mxu0
        %v348 = vxor.u32 %v342, 2147483648
        %v349 = vxor.u32 %v344, 2147483648
        %v350 = vmul.f32 %v348, 1.442695
        %v351 = vpow.pop %v350
        %v352 = vmul.f32 %v349, 1.442695
        %v353 = vpow.pop %v352
        %v354 = vadd.f32 %v351, 1.0
        %v355 = vadd.f32 %v353, 1.0
        %v356 = vrcp.pop %v354
        %v357 = vmul.f32 1.0, %v356
        %v358 = vrcp.pop %v355
        %v359 = vmul.f32 1.0, %v358
        %v360 = vmul.f32 %v342, %v357
        %v361 = vmul.f32 %v344, %v359
        %v362 = vlaneseq
        %v363 = vand.u32 %v362, 127
        %v364 = vadd.s32 %v363, 128
        %vm365 = vcmp.lt.s32.totalorder %v363, 0
        %v366 = vsub.s32 0, %v363
        %v367 = vsel %vm365, %v366, %v363
        %v368 = vshrl.u32 %v367, 4
        %v369 = vand.u32 %v367, 15
        %v370 = vsub.s32 0, %v369
        %v371 = vsel %vm365, %v370, %v369
        %vm372 = vcmp.lt.s32.totalorder %v364, 0
        %v373 = vsub.s32 0, %v364
        %v374 = vsel %vm372, %v373, %v364
        %v375 = vshrl.u32 %v374, 4
        %v376 = vand.u32 %v374, 15
        %v377 = vsub.s32 0, %v376
        %v378 = vsel %vm372, %v377, %v376
        %vm379 = vcmp.ne.s32.totalorder %v371, 0
        %vm380 = vcmp.ne.s32.totalorder %v378, 0
        %vm381 = vcmp.lt.s32.totalorder %v371, 0
        %vm382 = vcmp.lt.s32.totalorder %v378, 0
        %vm383 = vmand %vm381, %vm379
        %vm384 = vmand %vm382, %vm380
        %v385 = vadd.s32 %v371, 16
        %v386 = vadd.s32 %v378, 16
        %v387 = vsel %vm383, %v385, %v371
        %v388 = vsel %vm384, %v386, %v378
        %v389 = vpack.c.bf16 %v360, %v360
        %v390 = vpack.c.bf16 %v361, %v361
        %v393 = vunpack.c.l.b16 %v389
        %v394 = vunpack.c.l.b16 %v390
        %v395 = vpack.c.b16 %v394, %v393
        %397 = vst [vmem:[#allocation2] sm:$0x11] %v395
        %398 = vrot.lane.b32.xlu0 %v360, 127
        %v399 = vpop.permute.xlu0 %398
        %400 = vrot.lane.b32.xlu0 %v361, 127
        %v401 = vpop.permute.xlu0 %400
        %vm402 = vcmp.lt.s32.totalorder %v363, 127
        %v403 = vsel %vm402, %v399, %v401
        %v404 = vsel %vm402, %v401, %v399
        %vm405 = vcmp.lt.s32.totalorder %v387, 15
        %vm406 = vcmp.lt.s32.totalorder %v388, 15
        %v407 = vsel %vm405, %v403, -3.4028235e+38
        %v408 = vsel %vm406, %v404, -3.4028235e+38
        %v409 = vmax.f32 %v360, %v407
        %v410 = vmax.f32 %v361, %v408
        %411 = vrot.lane.b32.xlu0 %v360, 1
        %v412 = vpop.permute.xlu0 %411
        %413 = vrot.lane.b32.xlu0 %v361, 1
        %v414 = vpop.permute.xlu0 %413
        %vm415 = vcmp.lt.s32.totalorder %v363, 1
        %v416 = vsel %vm415, %v412, %v414
        %v417 = vsel %vm415, %v414, %v412
        %vm418 = vcmp.ge.s32.totalorder %v387, 1
        %vm419 = vcmp.ge.s32.totalorder %v388, 1
        %v420 = vsel %vm418, %v417, -3.4028235e+38
        %v421 = vsel %vm419, %v416, -3.4028235e+38
        %v422 = vmax.f32 %v409, %v420
        %v423 = vmax.f32 %v410, %v421
        %424 = vrot.lane.b32.xlu0 %v360, 126
        %v425 = vpop.permute.xlu0 %424
        %426 = vrot.lane.b32.xlu0 %v361, 126
        %v427 = vpop.permute.xlu0 %426
        %vm428 = vcmp.lt.s32.totalorder %v363, 126
        %v429 = vsel %vm428, %v425, %v427
        %v430 = vsel %vm428, %v427, %v425
        %vm431 = vcmp.lt.s32.totalorder %v387, 14
        %vm432 = vcmp.lt.s32.totalorder %v388, 14
        %v433 = vsel %vm431, %v429, -3.4028235e+38
        %v434 = vsel %vm432, %v430, -3.4028235e+38
        %v435 = vmax.f32 %v422, %v433
        %v436 = vmax.f32 %v423, %v434
        %437 = vrot.lane.b32.xlu0 %v360, 2
        %v438 = vpop.permute.xlu0 %437
        %439 = vrot.lane.b32.xlu0 %v361, 2
        %v440 = vpop.permute.xlu0 %439
        %vm441 = vcmp.lt.s32.totalorder %v363, 2
        %v442 = vsel %vm441, %v438, %v440
        %v443 = vsel %vm441, %v440, %v438
        %vm444 = vcmp.ge.s32.totalorder %v387, 2
        %vm445 = vcmp.ge.s32.totalorder %v388, 2
        %v446 = vsel %vm444, %v443, -3.4028235e+38
        %v447 = vsel %vm445, %v442, -3.4028235e+38
        %v448 = vmax.f32 %v435, %v446
        %v449 = vmax.f32 %v436, %v447
        %450 = vrot.lane.b32.xlu0 %v448, 112
        %v451 = vpop.permute.xlu0 %450
        %452 = vrot.lane.b32.xlu0 %v449, 112
        %v453 = vpop.permute.xlu0 %452
        %vm454 = vcmp.lt.s32.totalorder %v363, 112
        %v455 = vsel %vm454, %v451, %v453
        %v456 = vsel %vm454, %v453, %v451
        %vm457 = vcmp.lt.s32.totalorder %v363, 240
        %vm458 = vcmp.lt.s32.totalorder %v364, 240
        %v459 = vsel %vm457, %v455, -3.4028235e+38
        %v460 = vsel %vm458, %v456, -3.4028235e+38
        %v461 = vmax.f32 %v448, %v459
        %v462 = vmax.f32 %v449, %v460
        %463 = vrot.lane.b32.xlu0 %v448, 16
        %v464 = vpop.permute.xlu0 %463
        %465 = vrot.lane.b32.xlu0 %v449, 16
        %v466 = vpop.permute.xlu0 %465
        %vm467 = vcmp.lt.s32.totalorder %v363, 16
        %v468 = vsel %vm467, %v464, %v466
        %v469 = vsel %vm467, %v466, %v464
        %vm470 = vcmp.ge.s32.totalorder %v363, 16
        %vm471 = vcmp.ge.s32.totalorder %v364, 16
        %v472 = vsel %vm470, %v469, -3.4028235e+38
        %v473 = vsel %vm471, %v468, -3.4028235e+38
        %v474 = vmax.f32 %v461, %v472
        %v475 = vmax.f32 %v462, %v473
        %476 = vrot.lane.b32.xlu0 %v448, 96
        %v477 = vpop.permute.xlu0 %476
        %478 = vrot.lane.b32.xlu0 %v449, 96
        %v479 = vpop.permute.xlu0 %478
        %vm480 = vcmp.lt.s32.totalorder %v363, 96
        %v481 = vsel %vm480, %v477, %v479
        %v482 = vsel %vm480, %v479, %v477
        %vm483 = vcmp.lt.s32.totalorder %v363, 224
        %vm484 = vcmp.lt.s32.totalorder %v364, 224
        %v485 = vsel %vm483, %v481, -3.4028235e+38
        %v486 = vsel %vm484, %v482, -3.4028235e+38
        %v487 = vmax.f32 %v474, %v485
        %v488 = vmax.f32 %v475, %v486
        %489 = vrot.lane.b32.xlu0 %v448, 32
        %v490 = vpop.permute.xlu0 %489
        %491 = vrot.lane.b32.xlu0 %v449, 32
        %v492 = vpop.permute.xlu0 %491
        %vm493 = vcmp.lt.s32.totalorder %v363, 32
        %v494 = vsel %vm493, %v490, %v492
        %v495 = vsel %vm493, %v492, %v490
        %vm496 = vcmp.ge.s32.totalorder %v363, 32
        %vm497 = vcmp.ge.s32.totalorder %v364, 32
        %v498 = vsel %vm496, %v495, -3.4028235e+38
        %v499 = vsel %vm497, %v494, -3.4028235e+38
        %v500 = vmax.f32 %v487, %v498
        %v501 = vmax.f32 %v488, %v499
        %v502 = vpack.c.bf16 %v500, %v500
        %v503 = vpack.c.bf16 %v501, %v501
        %v506 = vunpack.c.l.b16 %v502
        %v507 = vunpack.c.l.b16 %v503
        %v508 = vpack.c.b16 %v507, %v506
        %v509 = vrot.slane %v508, 7
        %511 = vst [vmem:[#allocation2] sm:$0x22] %v509
        %512 = vrot.lane.b32.xlu0 %v500, 127
        %v513 = vpop.permute.xlu0 %512
        %514 = vrot.lane.b32.xlu0 %v501, 127
        %v515 = vpop.permute.xlu0 %514
        %v516 = vsel %vm402, %v513, %v515
        %v517 = vsel %vm402, %v515, %v513
        %v518 = vsel %vm405, %v516, -3.4028235e+38
        %v519 = vsel %vm406, %v517, -3.4028235e+38
        %v520 = vmax.f32 %v500, %v518
        %v521 = vmax.f32 %v501, %v519
        %522 = vrot.lane.b32.xlu0 %v500, 1
        %v523 = vpop.permute.xlu0 %522
        %524 = vrot.lane.b32.xlu0 %v501, 1
        %v525 = vpop.permute.xlu0 %524
        %v526 = vsel %vm415, %v523, %v525
        %v527 = vsel %vm415, %v525, %v523
        %v528 = vsel %vm418, %v527, -3.4028235e+38
        %v529 = vsel %vm419, %v526, -3.4028235e+38
        %v530 = vmax.f32 %v520, %v528
        %v531 = vmax.f32 %v521, %v529
        %532 = vrot.lane.b32.xlu0 %v500, 126
        %v533 = vpop.permute.xlu0 %532
        %534 = vrot.lane.b32.xlu0 %v501, 126
        %v535 = vpop.permute.xlu0 %534
        %v536 = vsel %vm428, %v533, %v535
        %v537 = vsel %vm428, %v535, %v533
        %v538 = vsel %vm431, %v536, -3.4028235e+38
        %v539 = vsel %vm432, %v537, -3.4028235e+38
        %v540 = vmax.f32 %v530, %v538
        %v541 = vmax.f32 %v531, %v539
        %542 = vrot.lane.b32.xlu0 %v500, 2
        %v543 = vpop.permute.xlu0 %542
        %544 = vrot.lane.b32.xlu0 %v501, 2
        %v545 = vpop.permute.xlu0 %544
        %v546 = vsel %vm441, %v543, %v545
        %v547 = vsel %vm441, %v545, %v543
        %v548 = vsel %vm444, %v547, -3.4028235e+38
        %v549 = vsel %vm445, %v546, -3.4028235e+38
        %v550 = vmax.f32 %v540, %v548
        %v551 = vmax.f32 %v541, %v549
        %552 = vrot.lane.b32.xlu0 %v550, 112
        %v553 = vpop.permute.xlu0 %552
        %554 = vrot.lane.b32.xlu0 %v551, 112
        %v555 = vpop.permute.xlu0 %554
        %v556 = vsel %vm454, %v553, %v555
        %v557 = vsel %vm454, %v555, %v553
        %v558 = vsel %vm457, %v556, -3.4028235e+38
        %v559 = vsel %vm458, %v557, -3.4028235e+38
        %v560 = vmax.f32 %v550, %v558
        %v561 = vmax.f32 %v551, %v559
        %562 = vrot.lane.b32.xlu0 %v550, 16
        %v563 = vpop.permute.xlu0 %562
        %564 = vrot.lane.b32.xlu0 %v551, 16
        %v565 = vpop.permute.xlu0 %564
        %v566 = vsel %vm467, %v563, %v565
        %v567 = vsel %vm467, %v565, %v563
        %v568 = vsel %vm470, %v567, -3.4028235e+38
        %v569 = vsel %vm471, %v566, -3.4028235e+38
        %v570 = vmax.f32 %v560, %v568
        %v571 = vmax.f32 %v561, %v569
        %572 = vrot.lane.b32.xlu0 %v550, 96
        %v573 = vpop.permute.xlu0 %572
        %574 = vrot.lane.b32.xlu0 %v551, 96
        %v575 = vpop.permute.xlu0 %574
        %v576 = vsel %vm480, %v573, %v575
        %v577 = vsel %vm480, %v575, %v573
        %v578 = vsel %vm483, %v576, -3.4028235e+38
        %v579 = vsel %vm484, %v577, -3.4028235e+38
        %v580 = vmax.f32 %v570, %v578
        %v581 = vmax.f32 %v571, %v579
        %582 = vrot.lane.b32.xlu0 %v550, 32
        %v583 = vpop.permute.xlu0 %582
        %584 = vrot.lane.b32.xlu0 %v551, 32
        %v585 = vpop.permute.xlu0 %584
        %v586 = vsel %vm493, %v583, %v585
        %v587 = vsel %vm493, %v585, %v583
        %v588 = vsel %vm496, %v587, -3.4028235e+38
        %v589 = vsel %vm497, %v586, -3.4028235e+38
        %v590 = vmax.f32 %v580, %v588
        %v591 = vmax.f32 %v581, %v589
        %v592 = vpack.c.bf16 %v590, %v590
        %v593 = vpack.c.bf16 %v591, %v591
        %v596 = vunpack.c.l.b16 %v592
        %v597 = vunpack.c.l.b16 %v593
        %v598 = vpack.c.b16 %v597, %v596
        %v599 = vrot.slane %v598, 6
        %601 = vst [vmem:[#allocation2] sm:$0x44] %v599
        %602 = vrot.lane.b32.xlu0 %v590, 127
        %v603 = vpop.permute.xlu0 %602
        %604 = vrot.lane.b32.xlu0 %v591, 127
        %v605 = vpop.permute.xlu0 %604
        %v606 = vsel %vm402, %v603, %v605
        %v607 = vsel %vm402, %v605, %v603
        %v608 = vsel %vm405, %v606, -3.4028235e+38
        %v609 = vsel %vm406, %v607, -3.4028235e+38
        %v610 = vmax.f32 %v590, %v608
        %v611 = vmax.f32 %v591, %v609
        %612 = vrot.lane.b32.xlu0 %v590, 1
        %v613 = vpop.permute.xlu0 %612
        %614 = vrot.lane.b32.xlu0 %v591, 1
        %v615 = vpop.permute.xlu0 %614
        %v616 = vsel %vm415, %v613, %v615
        %v617 = vsel %vm415, %v615, %v613
        %v618 = vsel %vm418, %v617, -3.4028235e+38
        %v619 = vsel %vm419, %v616, -3.4028235e+38
        %v620 = vmax.f32 %v610, %v618
        %v621 = vmax.f32 %v611, %v619
        %622 = vrot.lane.b32.xlu0 %v590, 126
        %v623 = vpop.permute.xlu0 %622
        %624 = vrot.lane.b32.xlu0 %v591, 126
        %v625 = vpop.permute.xlu0 %624
        %v626 = vsel %vm428, %v623, %v625
        %v627 = vsel %vm428, %v625, %v623
        %v628 = vsel %vm431, %v626, -3.4028235e+38
        %v629 = vsel %vm432, %v627, -3.4028235e+38
        %v630 = vmax.f32 %v620, %v628
        %v631 = vmax.f32 %v621, %v629
        %632 = vrot.lane.b32.xlu0 %v590, 2
        %v633 = vpop.permute.xlu0 %632
        %634 = vrot.lane.b32.xlu0 %v591, 2
        %v635 = vpop.permute.xlu0 %634
        %v636 = vsel %vm441, %v633, %v635
        %v637 = vsel %vm441, %v635, %v633
        %v638 = vsel %vm444, %v637, -3.4028235e+38
        %v639 = vsel %vm445, %v636, -3.4028235e+38
        %v640 = vmax.f32 %v630, %v638
        %v641 = vmax.f32 %v631, %v639
        %642 = vrot.lane.b32.xlu0 %v640, 112
        %v643 = vpop.permute.xlu0 %642
        %644 = vrot.lane.b32.xlu0 %v641, 112
        %v645 = vpop.permute.xlu0 %644
        %v646 = vsel %vm454, %v643, %v645
        %v647 = vsel %vm454, %v645, %v643
        %v648 = vsel %vm457, %v646, -3.4028235e+38
        %v649 = vsel %vm458, %v647, -3.4028235e+38
        %v650 = vmax.f32 %v640, %v648
        %v651 = vmax.f32 %v641, %v649
        %652 = vrot.lane.b32.xlu0 %v640, 16
        %v653 = vpop.permute.xlu0 %652
        %654 = vrot.lane.b32.xlu0 %v641, 16
        %v655 = vpop.permute.xlu0 %654
        %v656 = vsel %vm467, %v653, %v655
        %v657 = vsel %vm467, %v655, %v653
        %v658 = vsel %vm470, %v657, -3.4028235e+38
        %v659 = vsel %vm471, %v656, -3.4028235e+38
        %v660 = vmax.f32 %v650, %v658
        %v661 = vmax.f32 %v651, %v659
        %662 = vrot.lane.b32.xlu0 %v640, 96
        %v663 = vpop.permute.xlu0 %662
        %664 = vrot.lane.b32.xlu0 %v641, 96
        %v665 = vpop.permute.xlu0 %664
        %v666 = vsel %vm480, %v663, %v665
        %v667 = vsel %vm480, %v665, %v663
        %v668 = vsel %vm483, %v666, -3.4028235e+38
        %v669 = vsel %vm484, %v667, -3.4028235e+38
        %v670 = vmax.f32 %v660, %v668
        %v671 = vmax.f32 %v661, %v669
        %672 = vrot.lane.b32.xlu0 %v640, 32
        %v673 = vpop.permute.xlu0 %672
        %674 = vrot.lane.b32.xlu0 %v641, 32
        %v675 = vpop.permute.xlu0 %674
        %v676 = vsel %vm493, %v673, %v675
        %v677 = vsel %vm493, %v675, %v673
        %v678 = vsel %vm496, %v677, -3.4028235e+38
        %v679 = vsel %vm497, %v676, -3.4028235e+38
        %v680 = vmax.f32 %v670, %v678
        %v681 = vmax.f32 %v671, %v679
        %v682 = vpack.c.bf16 %v680, %v680
        %v683 = vpack.c.bf16 %v681, %v681
        %v686 = vunpack.c.l.b16 %v682
        %v687 = vunpack.c.l.b16 %v683
        %v688 = vpack.c.b16 %v687, %v686
        %v689 = vrot.slane %v688, 5
        %691 = vst [vmem:[#allocation2] sm:$0x88] %v689
        %v692 = vld [vmem:[%s273] sm:$0xf]
        %v693 = vld [vmem:[%s273 + $0x4] sm:$0xf]
        %v694 = vld [vmem:[#allocation2] sm:$0xff]
        %v695 = vld [vmem:[%s279] sm:$0xff]
        %v696 = vld [vmem:[%s279 + $0x8] sm:$0xff]
        %698 = vset.pattern.permute.xlu0 0
        %699 = vperm.xlu0 %698, %v695
        %v700 = vpop.permute.xlu0 %699
        %703 = vset.pattern.permute.xlu0 0
        %704 = vperm.xlu0 %703, %v696
        %v705 = vpop.permute.xlu0 %704
        %v709 = vunpack.c.l.b16 %v692
        %v710 = vunpack.c.l.b16 %v693
        %v711 = vpack.c.b16 %v710, %v709
        %v713 = vunpack.c.l.b16 %v694
        %v714 = vunpack.c.h.b16 %v694
        %v715 = vpack.c.b16 %v713, %v713
        %v716 = vpack.c.b16 %v714, %v714
        %vm717 = vcmask 64512
        %v719 = vsel %vm717, %v711, 0
        %vm721 = vcmask 1043456
        %v723 = vsel %vm721, %v715, 0
        %v726 = vsel %vm721, %v716, 0
        %728 = vmatprep.subr.bf16.mxu0 0
        %729 = vmatpush1.bf16.msra.mxu0 0
        %730 = vmatprep.subr.bf16.mxu0 0
        %731 = vmatpush1.bf16.msra.mxu0 0
        %732 = vmatprep.subr.bf16.mxu0 0
        %733 = vmatpush1.bf16.msra.mxu0 0
        %734 = vmatprep.subr.bf16.mxu0 0
        %735 = vmatpush1.bf16.msra.mxu0 0
        %736 = vmatprep.subr.bf16.mxu0 0
        %737 = vmatpush1.bf16.msra.mxu0 0
        %738 = vmatprep.subr.bf16.mxu0 0
        %739 = vmatpush1.bf16.msra.mxu0 0
        %740 = vmatprep.subr.bf16.mxu0 0
        %741 = vmatpush1.bf16.msra.mxu0 0
        %742 = vmatprep.subr.bf16.mxu0 %v726
        %743 = vmatpush1.bf16.msra.mxu0 %v723
        %744 = vmatprep.subr.bf16.mxu0 0
        %745 = vmatpush2.bf16.msra.mxu0 0
        %746 = vmatprep.subr.bf16.mxu0 0
        %747 = vmatpush2.bf16.msra.mxu0 0
        %748 = vmatprep.subr.bf16.mxu0 0
        %749 = vmatpush2.bf16.msra.mxu0 0
        %750 = vmatprep.subr.bf16.mxu0 0
        %751 = vmatpush2.bf16.msra.mxu0 0
        %752 = vmatprep.subr.bf16.mxu0 0
        %753 = vmatpush2.bf16.msra.mxu0 0
        %754 = vmatprep.subr.bf16.mxu0 0
        %755 = vmatpush2.bf16.msra.mxu0 0
        %756 = vmatprep.subr.bf16.mxu0 0
        %757 = vmatpush2.bf16.msra.mxu0 0
        %758 = vmatprep.subr.bf16.mxu0 0
        %759 = vmatpush2.bf16.msra.mxu0 0
        %760 = vmatprep.mubr.bf16.mxu0 0
        %761 = vmatmul.mubr.bf16.gmra.mxu0 %v719
        %v762 = vpop.f32.mrf.mxu0
        %v763 = vadd.f32 %v700, %v762
        %v764 = vpop.f32.mrf.mxu0
        %v765 = vadd.f32 %v700, %v764
        %v766 = vpop.f32.mrf.mxu0
        %v767 = vadd.f32 %v705, %v766
        %v768 = vpop.f32.mrf.mxu0
        %v769 = vadd.f32 %v705, %v768
        %770 = vdwg.mxu0
        %v771 = vxor.u32 %v763, 2147483648
        %v772 = vxor.u32 %v765, 2147483648
        %v773 = vxor.u32 %v767, 2147483648
        %v774 = vxor.u32 %v769, 2147483648
        %v775 = vmul.f32 %v771, 1.442695
        %v776 = vpow.pop %v775
        %v777 = vmul.f32 %v772, 1.442695
        %v778 = vpow.pop %v777
        %v779 = vmul.f32 %v773, 1.442695
        %v780 = vpow.pop %v779
        %v781 = vmul.f32 %v774, 1.442695
        %v782 = vpow.pop %v781
        %v783 = vadd.f32 %v776, 1.0
        %v784 = vadd.f32 %v778, 1.0
        %v785 = vadd.f32 %v780, 1.0
        %v786 = vadd.f32 %v782, 1.0
        %v787 = vrcp.pop %v783
        %v788 = vmul.f32 1.0, %v787
        %v789 = vrcp.pop %v784
        %v790 = vmul.f32 1.0, %v789
        %v791 = vrcp.pop %v785
        %v792 = vmul.f32 1.0, %v791
        %v793 = vrcp.pop %v786
        %v794 = vmul.f32 1.0, %v793
        %v795 = vmul.f32 %v763, %v788
        %v796 = vmul.f32 %v765, %v790
        %v797 = vmul.f32 %v767, %v792
        %v798 = vmul.f32 %v769, %v794
        %799 = vst [vmem:[%s263] sm:$0xff] %v795
        %800 = vst [vmem:[%s263 + $0x8] sm:$0xff] %v796
        %801 = vst [vmem:[%s263 + $0x10] sm:$0xff] %v797
        %802 = vst [vmem:[%s263 + $0x18] sm:$0xff] %v798
        %s803 = sand.u32 %s161, 1
        %s804 = scalar_lea.sflag [#allocation4], %s803
        %s805 = sand.u32 %s161, 1
        %s806 = smul.addr %s805, 32
        %s807 = scalar_lea.vmem [#allocation3], %s806
        // Predicated region
        $region41: #{tpu_custom_call.1} parent=39 // pred_check
          %p808 = pneg %p171
        $region42: #{tpu_custom_call.1} parent=39 // pred_check_branch
          %810 = sbr.rel (%p808) target = $region44
        $region43: #{tpu_custom_call.1} parent=39 // pred_region
          %s811 = smul.u32 2, %s24
          %s813 = ssub.s32 512, 512
          %814 = vsyncadd %s804, %s813
          %s815 = smul.addr %s811, 2
          %s816 = smul.addr %s23, 8
          %s817 = sadd.s32 %s815, %s816
          %s818 = smul.addr %s817, 128
          %s819 = scalar_lea.hbm %s5, %s818
          %s820 = sshll.u32 %s807, 4
          %s821 = int_to_ptr.vmem [resolvable:$true] %s820
          %826 = dma.vmem_to_hbm [thread:$0]  %s821, 512, %s819, %s804, 256, 256, 16
        $region44: #{tpu_custom_call.1} parent=39 // pred_fallthru
          _
      $region40: #{tpu_custom_call.1} parent=5 // pred_fallthru
        _
      %p827 = scmp.le.s32.totalorder 2, %s14
      // Predicated region
      $region45: #{tpu_custom_call.1} parent=5 // pred_check
        %p828 = pneg %p827
      $region46: #{tpu_custom_call.1} parent=5 // pred_check_branch
        %830 = sbr.rel (%p828) target = $region48
      $region47: #{tpu_custom_call.1} parent=5 // pred_region
        %s831 = ssub.s32 %s14, 2
        // Predicated region
        $region49: #{tpu_custom_call.1} parent=47 // pred_check
          %p832 = pneg %p177
        $region50: #{tpu_custom_call.1} parent=47 // pred_check_branch
          %834 = sbr.rel (%p832) target = $region52
        $region51: #{tpu_custom_call.1} parent=47 // pred_region
          %s835 = sand.u32 %s162, 1
          %s836 = scalar_lea.sflag [#allocation4], %s835
          %s837 = sand.u32 %s162, 1
          %s838 = smul.addr %s837, 32
          %s839 = scalar_lea.vmem [#allocation3], %s838
          %840 = dma.done %s836, 512
        $region52: #{tpu_custom_call.1} parent=47 // pred_fallthru
          _
      $region48: #{tpu_custom_call.1} parent=5 // pred_fallthru
        _
    $region6: #{tpu_custom_call.1} parent=1 // loop_footer
      %s18 = sadd.s32 1, %s14
    $region7: #{tpu_custom_call.1} parent=1 // loop_footer_branch
      %13 = sbr.rel target = $region3
    $region8: #{tpu_custom_call.1} parent=1 // loop_exit
      _
    %841 = vsyncpa [#allocation4], 1
    %s842 = scalar_lea.sflag [#allocation4], 1
    %843 = vsyncpa %s842, 1

</llo_original>
